<compile_context>
chip_gen: v6e
topology: v6e:2x2x1
jax: 0.10.0
libtpu: 0.0.40
codegen_flags: <defaults>
</compile_context>

<pallas_src>
import functools

import jax
import jax.numpy as jnp
from jax.experimental import pallas as pl
from jax.experimental.pallas import tpu as pltpu


def _deception_kernel(x_ref, wbd_ref, wc_ref, bias_ref, out_ref, *, num_classes):
    C = num_classes
    hp = jax.lax.Precision.HIGHEST

    # Bias slab [2, max(3H, C)]: sublane row 0 = [nlp|audio|visual] projection
    # biases, sublane row 1 (lanes 0:C) = classifier bias.  Sublane-row
    # indexing; no lane-offset extracts.
    b_proj = bias_ref[0:1, :]          # [1, 3H]
    b_cls = bias_ref[1:2, 0:C]         # [1, C]

    # One MXU matmul for all three modality projections (block-diagonal
    # weight), then ReLU on the VPU.  f32 accumulation.
    fused = jnp.maximum(
        jnp.dot(x_ref[...], wbd_ref[...],
                preferred_element_type=jnp.float32, precision=hp) + b_proj,
        0.0)

    # Fusion dropout: identity in eval mode.
    # Classifier: single MXU matmul against the pre-transposed [3H, C] weight.
    out = jnp.dot(fused, wc_ref[...],
                  preferred_element_type=jnp.float32, precision=hp) + b_cls
    out_ref[...] = out.astype(out_ref.dtype)


def prepare_params(params):
    """One-time parameter preparation (hoisted out of the per-call path).

    params: PyTorch-style dict with Linear weights (out, in) and biases (out,).
    Returns:
      w_bd : [Nn+Na+Nv, 3H] block-diagonal projection weight (input order
             [nlp|audio|visual], output order matching torch.cat).
      wc   : [3H, C] transposed classifier weight.
      bias : [2, max(3H, C)] bias slab (row 0 = projection, row 1 = classifier).
    """
    wn = jnp.asarray(params["nlp_w"], jnp.float32)          # [H, Nn]
    wa = jnp.asarray(params["audio_w"], jnp.float32)        # [H, Na]
    wv = jnp.asarray(params["visual_w"], jnp.float32)       # [H, Nv]
    wc = jnp.asarray(params["classifier_w"], jnp.float32).T  # [3H, C]

    H = wn.shape[0]
    Nn, Na, Nv = wn.shape[1], wa.shape[1], wv.shape[1]
    C = wc.shape[1]

    w_bd = jnp.zeros((Nn + Na + Nv, 3 * H), jnp.float32)
    w_bd = w_bd.at[0:Nn, 0:H].set(wn.T)
    w_bd = w_bd.at[Nn:Nn + Na, H:2 * H].set(wa.T)
    w_bd = w_bd.at[Nn + Na:Nn + Na + Nv, 2 * H:3 * H].set(wv.T)

    width = max(3 * H, C)
    bias = jnp.zeros((2, width), jnp.float32)
    bias = bias.at[0, 0:3 * H].set(jnp.concatenate([
        jnp.asarray(params["nlp_b"], jnp.float32),
        jnp.asarray(params["audio_b"], jnp.float32),
        jnp.asarray(params["visual_b"], jnp.float32),
    ]))
    bias = bias.at[1, 0:C].set(jnp.asarray(params["classifier_b"], jnp.float32))

    return dict(w_bd=w_bd, wc=wc, bias=bias)


@jax.jit
def multimodal_deception_forward(nlp_data, audio_data, visual_data, prep):
    """Forward pass. `prep` is the output of prepare_params (done once)."""
    # Pack the three modality inputs into one [B, Nn+Na+Nv] matrix (torch.cat
    # input order), matching the block-diagonal weight's row order.  This is a
    # tiny XLA copy that cuts three activation DMAs down to one.
    x = jnp.concatenate([nlp_data, audio_data, visual_data], axis=1)
    B = x.shape[0]
    C = prep["wc"].shape[1]

    vmem = lambda: pl.BlockSpec(memory_space=pltpu.VMEM)  # whole array in VMEM
    kernel = functools.partial(_deception_kernel, num_classes=C)

    return pl.pallas_call(
        kernel,
        out_shape=jax.ShapeDtypeStruct((B, C), jnp.float32),
        in_specs=[vmem() for _ in range(4)],
        out_specs=vmem(),
    )(x, prep["w_bd"], prep["wc"], prep["bias"])


def _init_linear(key, out_features, in_features):
    # PyTorch nn.Linear default init: U(-1/sqrt(fan_in), 1/sqrt(fan_in))
    kw, kb = jax.random.split(key)
    bound = 1.0 / jnp.sqrt(jnp.float32(in_features))
    w = jax.random.uniform(kw, (out_features, in_features), jnp.float32,
                           minval=-bound, maxval=bound)
    b = jax.random.uniform(kb, (out_features,), jnp.float32,
                           minval=-bound, maxval=bound)
    return w, b


if __name__ == "__main__":
    # Small shapes consistent with the module's forward.
    batch = 8
    nlp_input_size = 32
    audio_input_size = 16
    visual_input_size = 64
    hidden_size = 32
    num_classes = 4

    key = jax.random.PRNGKey(0)
    k_nlp, k_aud, k_vis, k_cls, k_xn, k_xa, k_xv = jax.random.split(key, 7)

    nlp_w, nlp_b = _init_linear(k_nlp, hidden_size, nlp_input_size)
    audio_w, audio_b = _init_linear(k_aud, hidden_size, audio_input_size)
    visual_w, visual_b = _init_linear(k_vis, hidden_size, visual_input_size)
    classifier_w, classifier_b = _init_linear(k_cls, num_classes, hidden_size * 3)

    params = dict(
        nlp_w=nlp_w, nlp_b=nlp_b,
        audio_w=audio_w, audio_b=audio_b,
        visual_w=visual_w, visual_b=visual_b,
        classifier_w=classifier_w, classifier_b=classifier_b,
    )
    prep = prepare_params(params)  # one-time prep, outside the forward path

    nlp_data = jax.random.normal(k_xn, (batch, nlp_input_size), jnp.float32)
    audio_data = jax.random.normal(k_xa, (batch, audio_input_size), jnp.float32)
    visual_data = jax.random.normal(k_xv, (batch, visual_input_size), jnp.float32)

    out = multimodal_deception_forward(nlp_data, audio_data, visual_data, prep)
    jax.block_until_ready(out)

    # Reference check in plain JAX (eval-mode dropout = identity), high-precision
    # matmuls so the comparison is apples-to-apples with the kernel.
    hp = jax.lax.Precision.HIGHEST

    def ref(xn, xa, xv):
        hn = jnp.maximum(jnp.dot(xn, nlp_w.T, precision=hp) + nlp_b, 0.0)
        ha = jnp.maximum(jnp.dot(xa, audio_w.T, precision=hp) + audio_b, 0.0)
        hv = jnp.maximum(jnp.dot(xv, visual_w.T, precision=hp) + visual_b, 0.0)
        fused = jnp.concatenate([hn, ha, hv], axis=1)
        return jnp.dot(fused, classifier_w.T, precision=hp) + classifier_b

    expected = ref(nlp_data, audio_data, visual_data)
    assert out.shape == (batch, num_classes)
    max_err = jnp.max(jnp.abs(out - expected))
    assert jnp.allclose(out, expected, atol=1e-5, rtol=1e-5), max_err

    print("KERNEL_OK")
</pallas_src>

<mosaic_0001>
module attributes {stable_mosaic.version = 11 : i64} {
  func.func @_deception_kernel(%arg0: memref<8x112xf32, #tpu.memory_space<vmem>>, %arg1: memref<112x96xf32, #tpu.memory_space<vmem>>, %arg2: memref<96x4xf32, #tpu.memory_space<vmem>>, %arg3: memref<2x96xf32, #tpu.memory_space<vmem>>, %arg4: memref<8x4xf32, #tpu.memory_space<vmem>>) attributes {dimension_semantics = [], scalar_prefetch = 0 : i64, scratch_operands = 0 : i64, tpu.core_type = #tpu.core_type<tc>} {
    %c0 = arith.constant 0 : index
    %c0_0 = arith.constant 0 : index
    %0 = vector.load %arg3[%c0, %c0_0] : memref<2x96xf32, #tpu.memory_space<vmem>>, vector<1x96xf32>
    %c1 = arith.constant 1 : index
    %c0_1 = arith.constant 0 : index
    %1 = vector.load %arg3[%c1, %c0_1] : memref<2x96xf32, #tpu.memory_space<vmem>>, vector<1x4xf32>
    %c0_2 = arith.constant 0 : index
    %c0_3 = arith.constant 0 : index
    %2 = vector.load %arg0[%c0_2, %c0_3] : memref<8x112xf32, #tpu.memory_space<vmem>>, vector<8x112xf32>
    %c0_4 = arith.constant 0 : index
    %c0_5 = arith.constant 0 : index
    %3 = vector.load %arg1[%c0_4, %c0_5] : memref<112x96xf32, #tpu.memory_space<vmem>>, vector<112x96xf32>
    %cst = arith.constant dense<0.000000e+00> : vector<8x96xf32>
    %4 = tpu.matmul %2, %3, %cst {dimension_numbers = #tpu.dot_dimension_numbers<[1], [0], [0], [1], [0, 0, 1, 1], [], []>, precision = #tpu.contract_precision<fp32>} : vector<8x112xf32>, vector<112x96xf32>, vector<8x96xf32> -> vector<8x96xf32>
    %5 = vector.broadcast %0 : vector<1x96xf32> to vector<8x96xf32>
    %6 = arith.addf %4, %5 : vector<8x96xf32>
    %cst_6 = arith.constant 0.000000e+00 : f32
    %7 = vector.broadcast %cst_6 : f32 to vector<8x96xf32>
    %8 = arith.maximumf %6, %7 : vector<8x96xf32>
    %c0_7 = arith.constant 0 : index
    %c0_8 = arith.constant 0 : index
    %9 = vector.load %arg2[%c0_7, %c0_8] : memref<96x4xf32, #tpu.memory_space<vmem>>, vector<96x4xf32>
    %cst_9 = arith.constant dense<0.000000e+00> : vector<8x4xf32>
    %10 = tpu.matmul %8, %9, %cst_9 {dimension_numbers = #tpu.dot_dimension_numbers<[1], [0], [0], [1], [0, 0, 1, 1], [], []>, precision = #tpu.contract_precision<fp32>} : vector<8x96xf32>, vector<96x4xf32>, vector<8x4xf32> -> vector<8x4xf32>
    %11 = vector.broadcast %1 : vector<1x4xf32> to vector<8x4xf32>
    %12 = arith.addf %10, %11 : vector<8x4xf32>
    %c0_10 = arith.constant 0 : index
    %c0_11 = arith.constant 0 : index
    %13 = vector.load %arg4[%c0_10, %c0_11] : memref<8x4xf32, #tpu.memory_space<vmem>>, vector<8x4xf32>
    tpu.vector_store %arg4[%c0_10, %c0_11], %12 {strides = array<i32>} : memref<8x4xf32, #tpu.memory_space<vmem>>, vector<8x4xf32>,
    return
  }
}

</mosaic_0001>

<llo_original>
// kernel: multimodal_deception_forward.1
$region0: #{multimodal_deception_forward.1}
  #allocation0 [shape = 'u32[]', space=smem, size = 0x4, offset = 0x4, fixed_abs, tag = 'smem constant byte address 0x4 - core index']
  #allocation1 [shape = 'u32[144,128]{1,0:T(1,128)}', space=vmem, size = 0x12000, scoped, tag = 'internal scratch']
  %s0 = inlined_call_operand.vmem [shape: f32[8,112], index: 0, kind: input, shape index: {}]
  %s1 = inlined_call_operand.vmem [shape: f32[112,96], index: 1, kind: input, shape index: {}]
  %s2 = inlined_call_operand.vmem [shape: f32[96,4], index: 2, kind: input, shape index: {}]
  %s3 = inlined_call_operand.vmem [shape: f32[2,96], index: 3, kind: input, shape index: {}]
  %s4 = inlined_call_operand.vmem [shape: f32[8,4], index: 4, kind: output, shape index: {}]
  %s5 = sld [smem:[#allocation0]]
  $region26: #{multimodal_deception_forward.1} parent=0
    _
  %s7 = ssub.s32 1, %s5
  %s8 = scalar_select 0, %s7, %s5
  // Predicated region
  $region2: #{multimodal_deception_forward.1} parent=0 // pred_check
    _
  $region3: #{multimodal_deception_forward.1} parent=0 // pred_check_branch
    %10 = sbr.rel (0) target = $region5
  $region4: #{multimodal_deception_forward.1} parent=0 // pred_region
    _
  $region5: #{multimodal_deception_forward.1} parent=0 // pred_fallthru
    _
  // Predicated region
  $region6: #{multimodal_deception_forward.1} parent=0 // pred_check
    _
  $region7: #{multimodal_deception_forward.1} parent=0 // pred_check_branch
    %12 = sbr.rel (0) target = $region9
  $region8: #{multimodal_deception_forward.1} parent=0 // pred_region
    _
  $region9: #{multimodal_deception_forward.1} parent=0 // pred_fallthru
    _
  // Predicated region
  $region10: #{multimodal_deception_forward.1} parent=0 // pred_check
    _
  $region11: #{multimodal_deception_forward.1} parent=0 // pred_check_branch
    %14 = sbr.rel (0) target = $region13
  $region12: #{multimodal_deception_forward.1} parent=0 // pred_region
    _
  $region13: #{multimodal_deception_forward.1} parent=0 // pred_fallthru
    _
  // Predicated region
  $region14: #{multimodal_deception_forward.1} parent=0 // pred_check
    _
  $region15: #{multimodal_deception_forward.1} parent=0 // pred_check_branch
    %16 = sbr.rel (0) target = $region17
  $region16: #{multimodal_deception_forward.1} parent=0 // pred_region
    _
  $region17: #{multimodal_deception_forward.1} parent=0 // pred_fallthru
    _
  %v17 = vld [vmem:[%s3] sm:$0x1]
  %v18 = vld [vmem:[%s3 + $0x1] sm:$0x1]
  %v19 = vld [vmem:[%s0] sm:$0xff]
  %v20 = vld [vmem:[%s1] sm:$0xff]
  %v21 = vld [vmem:[%s1 + $0x8] sm:$0xff]
  %v22 = vld [vmem:[%s1 + $0x10] sm:$0xff]
  %v23 = vld [vmem:[%s1 + $0x18] sm:$0xff]
  %v24 = vld [vmem:[%s1 + $0x20] sm:$0xff]
  %v25 = vld [vmem:[%s1 + $0x28] sm:$0xff]
  %v26 = vld [vmem:[%s1 + $0x30] sm:$0xff]
  %v27 = vld [vmem:[%s1 + $0x38] sm:$0xff]
  %v28 = vld [vmem:[%s1 + $0x40] sm:$0xff]
  %v29 = vld [vmem:[%s1 + $0x48] sm:$0xff]
  %v30 = vld [vmem:[%s1 + $0x50] sm:$0xff]
  %v31 = vld [vmem:[%s1 + $0x58] sm:$0xff]
  %v32 = vld [vmem:[%s1 + $0x60] sm:$0xff]
  %v33 = vld [vmem:[%s1 + $0x68] sm:$0xff]
  %v34 = vlaneseq
  %v35 = vshrl.u32 %v34, 7
  %v36 = vsub.s32 0, %v35
  %v37 = vrot.slane %v17, %v36
  %vm38 = vcmask 916480
  %v40 = vsel %vm38, %v19, 0
  %42 = vmatprep.subr.mxu0 0.0
  %43 = vmatpush1.msra.mxu0 0.0
  %44 = vmatprep.subr.mxu0 0.0
  %45 = vmatpush1.msra.mxu0 0.0
  %46 = vmatprep.subr.mxu0 0.0
  %v47 = vand.u32 %v33, 4294901760
  %48 = vmatpush1.msra.mxu0 %v47
  %49 = vmatprep.subr.mxu0 0.0
  %v50 = vand.u32 %v32, 4294901760
  %51 = vmatpush1.msra.mxu0 %v50
  %52 = vmatprep.subr.mxu0 0.0
  %v53 = vand.u32 %v31, 4294901760
  %54 = vmatpush1.msra.mxu0 %v53
  %55 = vmatprep.subr.mxu0 0.0
  %v56 = vand.u32 %v30, 4294901760
  %57 = vmatpush1.msra.mxu0 %v56
  %58 = vmatprep.subr.mxu0 0.0
  %v59 = vand.u32 %v29, 4294901760
  %60 = vmatpush1.msra.mxu0 %v59
  %61 = vmatprep.subr.mxu0 0.0
  %v62 = vand.u32 %v28, 4294901760
  %63 = vmatpush1.msra.mxu0 %v62
  %64 = vmatprep.subr.mxu0 0.0
  %v65 = vand.u32 %v27, 4294901760
  %66 = vmatpush1.msra.mxu0 %v65
  %67 = vmatprep.subr.mxu0 0.0
  %v68 = vand.u32 %v26, 4294901760
  %69 = vmatpush1.msra.mxu0 %v68
  %70 = vmatprep.subr.mxu0 0.0
  %v71 = vand.u32 %v25, 4294901760
  %72 = vmatpush1.msra.mxu0 %v71
  %73 = vmatprep.subr.mxu0 0.0
  %v74 = vand.u32 %v24, 4294901760
  %75 = vmatpush1.msra.mxu0 %v74
  %76 = vmatprep.subr.mxu0 0.0
  %v77 = vand.u32 %v23, 4294901760
  %78 = vmatpush1.msra.mxu0 %v77
  %79 = vmatprep.subr.mxu0 0.0
  %v80 = vand.u32 %v22, 4294901760
  %81 = vmatpush1.msra.mxu0 %v80
  %82 = vmatprep.subr.mxu0 0.0
  %v83 = vand.u32 %v21, 4294901760
  %84 = vmatpush1.msra.mxu0 %v83
  %85 = vmatprep.subr.mxu0 0.0
  %v86 = vand.u32 %v20, 4294901760
  %87 = vmatpush1.msra.mxu0 %v86
  %88 = vmatprep.subr.mxu0 0.0
  %89 = vmatpush2.msra.mxu0 0.0
  %90 = vmatprep.subr.mxu0 0.0
  %91 = vmatpush2.msra.mxu0 0.0
  %92 = vmatprep.subr.mxu0 0.0
  %93 = vmatpush2.msra.mxu0 0.0
  %94 = vmatprep.subr.mxu0 0.0
  %95 = vmatpush2.msra.mxu0 0.0
  %96 = vmatprep.subr.mxu0 0.0
  %97 = vmatpush2.msra.mxu0 0.0
  %98 = vmatprep.subr.mxu0 0.0
  %99 = vmatpush2.msra.mxu0 0.0
  %100 = vmatprep.subr.mxu0 0.0
  %101 = vmatpush2.msra.mxu0 0.0
  %102 = vmatprep.subr.mxu0 0.0
  %103 = vmatpush2.msra.mxu0 0.0
  %104 = vmatprep.subr.mxu0 0.0
  %105 = vmatpush2.msra.mxu0 0.0
  %106 = vmatprep.subr.mxu0 0.0
  %107 = vmatpush2.msra.mxu0 0.0
  %108 = vmatprep.subr.mxu0 0.0
  %109 = vmatpush2.msra.mxu0 0.0
  %110 = vmatprep.subr.mxu0 0.0
  %111 = vmatpush2.msra.mxu0 0.0
  %112 = vmatprep.subr.mxu0 0.0
  %113 = vmatpush2.msra.mxu0 0.0
  %114 = vmatprep.subr.mxu0 0.0
  %115 = vmatpush2.msra.mxu0 0.0
  %116 = vmatprep.subr.mxu0 0.0
  %117 = vmatpush2.msra.mxu0 0.0
  %118 = vmatprep.subr.mxu0 0.0
  %119 = vmatpush2.msra.mxu0 0.0
  %120 = vmatprep.mubr.f32.mxu0 0.0
  %v121 = vand.u32 %v40, 4294901760
  %v122 = vsub.f32 %v40, %v121
  %v123 = vand.u32 %v122, 4294901760
  %v124 = vsub.f32 %v122, %v123
  %v125 = vand.u32 %v124, 4294901760
  %126 = vmatmul.mubr.f32.gmra.mxu0 %v125
  %v127 = vpop.f32.mrf.mxu0
  %v128 = vadd.f32 %v37, %v127
  %v129 = vpop.f32.mrf.mxu0
  %130 = vdwg.mxu0
  %131 = vmatprep.subr.mxu0 0.0
  %132 = vmatpush1.msra.mxu0 0.0
  %133 = vmatprep.subr.mxu0 0.0
  %134 = vmatpush1.msra.mxu0 0.0
  %135 = vmatprep.subr.mxu0 0.0
  %v136 = vand.u32 %v33, 4294901760
  %v137 = vsub.f32 %v33, %v136
  %v138 = vand.u32 %v137, 4294901760
  %v139 = vsub.f32 %v137, %v138
  %v140 = vand.u32 %v139, 4294901760
  %141 = vmatpush1.msra.mxu0 %v140
  %142 = vmatprep.subr.mxu0 0.0
  %v143 = vand.u32 %v32, 4294901760
  %v144 = vsub.f32 %v32, %v143
  %v145 = vand.u32 %v144, 4294901760
  %v146 = vsub.f32 %v144, %v145
  %v147 = vand.u32 %v146, 4294901760
  %148 = vmatpush1.msra.mxu0 %v147
  %149 = vmatprep.subr.mxu0 0.0
  %v150 = vand.u32 %v31, 4294901760
  %v151 = vsub.f32 %v31, %v150
  %v152 = vand.u32 %v151, 4294901760
  %v153 = vsub.f32 %v151, %v152
  %v154 = vand.u32 %v153, 4294901760
  %155 = vmatpush1.msra.mxu0 %v154
  %156 = vmatprep.subr.mxu0 0.0
  %v157 = vand.u32 %v30, 4294901760
  %v158 = vsub.f32 %v30, %v157
  %v159 = vand.u32 %v158, 4294901760
  %v160 = vsub.f32 %v158, %v159
  %v161 = vand.u32 %v160, 4294901760
  %162 = vmatpush1.msra.mxu0 %v161
  %163 = vmatprep.subr.mxu0 0.0
  %v164 = vand.u32 %v29, 4294901760
  %v165 = vsub.f32 %v29, %v164
  %v166 = vand.u32 %v165, 4294901760
  %v167 = vsub.f32 %v165, %v166
  %v168 = vand.u32 %v167, 4294901760
  %169 = vmatpush1.msra.mxu0 %v168
  %170 = vmatprep.subr.mxu0 0.0
  %v171 = vand.u32 %v28, 4294901760
  %v172 = vsub.f32 %v28, %v171
  %v173 = vand.u32 %v172, 4294901760
  %v174 = vsub.f32 %v172, %v173
  %v175 = vand.u32 %v174, 4294901760
  %176 = vmatpush1.msra.mxu0 %v175
  %177 = vmatprep.subr.mxu0 0.0
  %v178 = vand.u32 %v27, 4294901760
  %v179 = vsub.f32 %v27, %v178
  %v180 = vand.u32 %v179, 4294901760
  %v181 = vsub.f32 %v179, %v180
  %v182 = vand.u32 %v181, 4294901760
  %183 = vmatpush1.msra.mxu0 %v182
  %184 = vmatprep.subr.mxu0 0.0
  %v185 = vand.u32 %v26, 4294901760
  %v186 = vsub.f32 %v26, %v185
  %v187 = vand.u32 %v186, 4294901760
  %v188 = vsub.f32 %v186, %v187
  %v189 = vand.u32 %v188, 4294901760
  %190 = vmatpush1.msra.mxu0 %v189
  %191 = vmatprep.subr.mxu0 0.0
  %v192 = vand.u32 %v25, 4294901760
  %v193 = vsub.f32 %v25, %v192
  %v194 = vand.u32 %v193, 4294901760
  %v195 = vsub.f32 %v193, %v194
  %v196 = vand.u32 %v195, 4294901760
  %197 = vmatpush1.msra.mxu0 %v196
  %198 = vmatprep.subr.mxu0 0.0
  %v199 = vand.u32 %v24, 4294901760
  %v200 = vsub.f32 %v24, %v199
  %v201 = vand.u32 %v200, 4294901760
  %v202 = vsub.f32 %v200, %v201
  %v203 = vand.u32 %v202, 4294901760
  %204 = vmatpush1.msra.mxu0 %v203
  %205 = vmatprep.subr.mxu0 0.0
  %v206 = vand.u32 %v23, 4294901760
  %v207 = vsub.f32 %v23, %v206
  %v208 = vand.u32 %v207, 4294901760
  %v209 = vsub.f32 %v207, %v208
  %v210 = vand.u32 %v209, 4294901760
  %211 = vmatpush1.msra.mxu0 %v210
  %212 = vmatprep.subr.mxu0 0.0
  %v213 = vand.u32 %v22, 4294901760
  %v214 = vsub.f32 %v22, %v213
  %v215 = vand.u32 %v214, 4294901760
  %v216 = vsub.f32 %v214, %v215
  %v217 = vand.u32 %v216, 4294901760
  %218 = vmatpush1.msra.mxu0 %v217
  %219 = vmatprep.subr.mxu0 0.0
  %v220 = vand.u32 %v21, 4294901760
  %v221 = vsub.f32 %v21, %v220
  %v222 = vand.u32 %v221, 4294901760
  %v223 = vsub.f32 %v221, %v222
  %v224 = vand.u32 %v223, 4294901760
  %225 = vmatpush1.msra.mxu0 %v224
  %226 = vmatprep.subr.mxu0 0.0
  %v227 = vand.u32 %v20, 4294901760
  %v228 = vsub.f32 %v20, %v227
  %v229 = vand.u32 %v228, 4294901760
  %v230 = vsub.f32 %v228, %v229
  %v231 = vand.u32 %v230, 4294901760
  %232 = vmatpush1.msra.mxu0 %v231
  %233 = vmatprep.subr.mxu0 0.0
  %234 = vmatpush2.msra.mxu0 0.0
  %235 = vmatprep.subr.mxu0 0.0
  %236 = vmatpush2.msra.mxu0 0.0
  %237 = vmatprep.subr.mxu0 0.0
  %238 = vmatpush2.msra.mxu0 0.0
  %239 = vmatprep.subr.mxu0 0.0
  %240 = vmatpush2.msra.mxu0 0.0
  %241 = vmatprep.subr.mxu0 0.0
  %242 = vmatpush2.msra.mxu0 0.0
  %243 = vmatprep.subr.mxu0 0.0
  %244 = vmatpush2.msra.mxu0 0.0
  %245 = vmatprep.subr.mxu0 0.0
  %246 = vmatpush2.msra.mxu0 0.0
  %247 = vmatprep.subr.mxu0 0.0
  %248 = vmatpush2.msra.mxu0 0.0
  %249 = vmatprep.subr.mxu0 0.0
  %250 = vmatpush2.msra.mxu0 0.0
  %251 = vmatprep.subr.mxu0 0.0
  %252 = vmatpush2.msra.mxu0 0.0
  %253 = vmatprep.subr.mxu0 0.0
  %254 = vmatpush2.msra.mxu0 0.0
  %255 = vmatprep.subr.mxu0 0.0
  %256 = vmatpush2.msra.mxu0 0.0
  %257 = vmatprep.subr.mxu0 0.0
  %258 = vmatpush2.msra.mxu0 0.0
  %259 = vmatprep.subr.mxu0 0.0
  %260 = vmatpush2.msra.mxu0 0.0
  %261 = vmatprep.subr.mxu0 0.0
  %262 = vmatpush2.msra.mxu0 0.0
  %263 = vmatprep.subr.mxu0 0.0
  %264 = vmatpush2.msra.mxu0 0.0
  %265 = vmatprep.mubr.f32.mxu0 0.0
  %v266 = vand.u32 %v40, 4294901760
  %267 = vmatmul.mubr.f32.gmra.mxu0 %v266
  %v268 = vpop.f32.mrf.mxu0
  %v269 = vadd.f32 %v128, %v268
  %v270 = vpop.f32.mrf.mxu0
  %271 = vdwg.mxu0
  %272 = vmatprep.subr.mxu0 0.0
  %273 = vmatpush1.msra.mxu0 0.0
  %274 = vmatprep.subr.mxu0 0.0
  %275 = vmatpush1.msra.mxu0 0.0
  %276 = vmatprep.subr.mxu0 0.0
  %v277 = vand.u32 %v33, 4294901760
  %v278 = vsub.f32 %v33, %v277
  %279 = vmatpush1.msra.mxu0 %v278
  %280 = vmatprep.subr.mxu0 0.0
  %v281 = vand.u32 %v32, 4294901760
  %v282 = vsub.f32 %v32, %v281
  %283 = vmatpush1.msra.mxu0 %v282
  %284 = vmatprep.subr.mxu0 0.0
  %v285 = vand.u32 %v31, 4294901760
  %v286 = vsub.f32 %v31, %v285
  %287 = vmatpush1.msra.mxu0 %v286
  %288 = vmatprep.subr.mxu0 0.0
  %v289 = vand.u32 %v30, 4294901760
  %v290 = vsub.f32 %v30, %v289
  %291 = vmatpush1.msra.mxu0 %v290
  %292 = vmatprep.subr.mxu0 0.0
  %v293 = vand.u32 %v29, 4294901760
  %v294 = vsub.f32 %v29, %v293
  %295 = vmatpush1.msra.mxu0 %v294
  %296 = vmatprep.subr.mxu0 0.0
  %v297 = vand.u32 %v28, 4294901760
  %v298 = vsub.f32 %v28, %v297
  %299 = vmatpush1.msra.mxu0 %v298
  %300 = vmatprep.subr.mxu0 0.0
  %v301 = vand.u32 %v27, 4294901760
  %v302 = vsub.f32 %v27, %v301
  %303 = vmatpush1.msra.mxu0 %v302
  %304 = vmatprep.subr.mxu0 0.0
  %v305 = vand.u32 %v26, 4294901760
  %v306 = vsub.f32 %v26, %v305
  %307 = vmatpush1.msra.mxu0 %v306
  %308 = vmatprep.subr.mxu0 0.0
  %v309 = vand.u32 %v25, 4294901760
  %v310 = vsub.f32 %v25, %v309
  %311 = vmatpush1.msra.mxu0 %v310
  %312 = vmatprep.subr.mxu0 0.0
  %v313 = vand.u32 %v24, 4294901760
  %v314 = vsub.f32 %v24, %v313
  %315 = vmatpush1.msra.mxu0 %v314
  %316 = vmatprep.subr.mxu0 0.0
  %v317 = vand.u32 %v23, 4294901760
  %v318 = vsub.f32 %v23, %v317
  %319 = vmatpush1.msra.mxu0 %v318
  %320 = vmatprep.subr.mxu0 0.0
  %v321 = vand.u32 %v22, 4294901760
  %v322 = vsub.f32 %v22, %v321
  %323 = vmatpush1.msra.mxu0 %v322
  %324 = vmatprep.subr.mxu0 0.0
  %v325 = vand.u32 %v21, 4294901760
  %v326 = vsub.f32 %v21, %v325
  %327 = vmatpush1.msra.mxu0 %v326
  %328 = vmatprep.subr.mxu0 0.0
  %v329 = vand.u32 %v20, 4294901760
  %v330 = vsub.f32 %v20, %v329
  %331 = vmatpush1.msra.mxu0 %v330
  %332 = vmatprep.subr.mxu0 0.0
  %333 = vmatpush2.msra.mxu0 0.0
  %334 = vmatprep.subr.mxu0 0.0
  %335 = vmatpush2.msra.mxu0 0.0
  %336 = vmatprep.subr.mxu0 0.0
  %337 = vmatpush2.msra.mxu0 0.0
  %338 = vmatprep.subr.mxu0 0.0
  %339 = vmatpush2.msra.mxu0 0.0
  %340 = vmatprep.subr.mxu0 0.0
  %341 = vmatpush2.msra.mxu0 0.0
  %342 = vmatprep.subr.mxu0 0.0
  %343 = vmatpush2.msra.mxu0 0.0
  %344 = vmatprep.subr.mxu0 0.0
  %345 = vmatpush2.msra.mxu0 0.0
  %346 = vmatprep.subr.mxu0 0.0
  %347 = vmatpush2.msra.mxu0 0.0
  %348 = vmatprep.subr.mxu0 0.0
  %349 = vmatpush2.msra.mxu0 0.0
  %350 = vmatprep.subr.mxu0 0.0
  %351 = vmatpush2.msra.mxu0 0.0
  %352 = vmatprep.subr.mxu0 0.0
  %353 = vmatpush2.msra.mxu0 0.0
  %354 = vmatprep.subr.mxu0 0.0
  %355 = vmatpush2.msra.mxu0 0.0
  %356 = vmatprep.subr.mxu0 0.0
  %357 = vmatpush2.msra.mxu0 0.0
  %358 = vmatprep.subr.mxu0 0.0
  %359 = vmatpush2.msra.mxu0 0.0
  %360 = vmatprep.subr.mxu0 0.0
  %361 = vmatpush2.msra.mxu0 0.0
  %362 = vmatprep.subr.mxu0 0.0
  %363 = vmatpush2.msra.mxu0 0.0
  %364 = vmatprep.mubr.f32.mxu0 0.0
  %v365 = vand.u32 %v40, 4294901760
  %v366 = vsub.f32 %v40, %v365
  %367 = vmatmul.mubr.f32.gmra.mxu0 %v366
  %v368 = vpop.f32.mrf.mxu0
  %v369 = vadd.f32 %v269, %v368
  %v370 = vpop.f32.mrf.mxu0
  %371 = vdwg.mxu0
  %372 = vmatprep.subr.mxu0 0.0
  %373 = vmatpush1.msra.mxu0 0.0
  %374 = vmatprep.subr.mxu0 0.0
  %375 = vmatpush1.msra.mxu0 0.0
  %376 = vmatprep.subr.mxu0 0.0
  %v377 = vand.u32 %v33, 4294901760
  %378 = vmatpush1.msra.mxu0 %v377
  %379 = vmatprep.subr.mxu0 0.0
  %v380 = vand.u32 %v32, 4294901760
  %381 = vmatpush1.msra.mxu0 %v380
  %382 = vmatprep.subr.mxu0 0.0
  %v383 = vand.u32 %v31, 4294901760
  %384 = vmatpush1.msra.mxu0 %v383
  %385 = vmatprep.subr.mxu0 0.0
  %v386 = vand.u32 %v30, 4294901760
  %387 = vmatpush1.msra.mxu0 %v386
  %388 = vmatprep.subr.mxu0 0.0
  %v389 = vand.u32 %v29, 4294901760
  %390 = vmatpush1.msra.mxu0 %v389
  %391 = vmatprep.subr.mxu0 0.0
  %v392 = vand.u32 %v28, 4294901760
  %393 = vmatpush1.msra.mxu0 %v392
  %394 = vmatprep.subr.mxu0 0.0
  %v395 = vand.u32 %v27, 4294901760
  %396 = vmatpush1.msra.mxu0 %v395
  %397 = vmatprep.subr.mxu0 0.0
  %v398 = vand.u32 %v26, 4294901760
  %399 = vmatpush1.msra.mxu0 %v398
  %400 = vmatprep.subr.mxu0 0.0
  %v401 = vand.u32 %v25, 4294901760
  %402 = vmatpush1.msra.mxu0 %v401
  %403 = vmatprep.subr.mxu0 0.0
  %v404 = vand.u32 %v24, 4294901760
  %405 = vmatpush1.msra.mxu0 %v404
  %406 = vmatprep.subr.mxu0 0.0
  %v407 = vand.u32 %v23, 4294901760
  %408 = vmatpush1.msra.mxu0 %v407
  %409 = vmatprep.subr.mxu0 0.0
  %v410 = vand.u32 %v22, 4294901760
  %411 = vmatpush1.msra.mxu0 %v410
  %412 = vmatprep.subr.mxu0 0.0
  %v413 = vand.u32 %v21, 4294901760
  %414 = vmatpush1.msra.mxu0 %v413
  %415 = vmatprep.subr.mxu0 0.0
  %v416 = vand.u32 %v20, 4294901760
  %417 = vmatpush1.msra.mxu0 %v416
  %418 = vmatprep.subr.mxu0 0.0
  %419 = vmatpush2.msra.mxu0 0.0
  %420 = vmatprep.subr.mxu0 0.0
  %421 = vmatpush2.msra.mxu0 0.0
  %422 = vmatprep.subr.mxu0 0.0
  %423 = vmatpush2.msra.mxu0 0.0
  %424 = vmatprep.subr.mxu0 0.0
  %425 = vmatpush2.msra.mxu0 0.0
  %426 = vmatprep.subr.mxu0 0.0
  %427 = vmatpush2.msra.mxu0 0.0
  %428 = vmatprep.subr.mxu0 0.0
  %429 = vmatpush2.msra.mxu0 0.0
  %430 = vmatprep.subr.mxu0 0.0
  %431 = vmatpush2.msra.mxu0 0.0
  %432 = vmatprep.subr.mxu0 0.0
  %433 = vmatpush2.msra.mxu0 0.0
  %434 = vmatprep.subr.mxu0 0.0
  %435 = vmatpush2.msra.mxu0 0.0
  %436 = vmatprep.subr.mxu0 0.0
  %437 = vmatpush2.msra.mxu0 0.0
  %438 = vmatprep.subr.mxu0 0.0
  %439 = vmatpush2.msra.mxu0 0.0
  %440 = vmatprep.subr.mxu0 0.0
  %441 = vmatpush2.msra.mxu0 0.0
  %442 = vmatprep.subr.mxu0 0.0
  %443 = vmatpush2.msra.mxu0 0.0
  %444 = vmatprep.subr.mxu0 0.0
  %445 = vmatpush2.msra.mxu0 0.0
  %446 = vmatprep.subr.mxu0 0.0
  %447 = vmatpush2.msra.mxu0 0.0
  %448 = vmatprep.subr.mxu0 0.0
  %449 = vmatpush2.msra.mxu0 0.0
  %450 = vmatprep.mubr.f32.mxu0 0.0
  %v451 = vand.u32 %v40, 4294901760
  %v452 = vsub.f32 %v40, %v451
  %v453 = vand.u32 %v452, 4294901760
  %454 = vmatmul.mubr.f32.gmra.mxu0 %v453
  %v455 = vpop.f32.mrf.mxu0
  %v456 = vadd.f32 %v369, %v455
  %v457 = vpop.f32.mrf.mxu0
  %458 = vdwg.mxu0
  %459 = vmatprep.subr.mxu0 0.0
  %460 = vmatpush1.msra.mxu0 0.0
  %461 = vmatprep.subr.mxu0 0.0
  %462 = vmatpush1.msra.mxu0 0.0
  %463 = vmatprep.subr.mxu0 0.0
  %v464 = vand.u32 %v33, 4294901760
  %v465 = vsub.f32 %v33, %v464
  %v466 = vand.u32 %v465, 4294901760
  %467 = vmatpush1.msra.mxu0 %v466
  %468 = vmatprep.subr.mxu0 0.0
  %v469 = vand.u32 %v32, 4294901760
  %v470 = vsub.f32 %v32, %v469
  %v471 = vand.u32 %v470, 4294901760
  %472 = vmatpush1.msra.mxu0 %v471
  %473 = vmatprep.subr.mxu0 0.0
  %v474 = vand.u32 %v31, 4294901760
  %v475 = vsub.f32 %v31, %v474
  %v476 = vand.u32 %v475, 4294901760
  %477 = vmatpush1.msra.mxu0 %v476
  %478 = vmatprep.subr.mxu0 0.0
  %v479 = vand.u32 %v30, 4294901760
  %v480 = vsub.f32 %v30, %v479
  %v481 = vand.u32 %v480, 4294901760
  %482 = vmatpush1.msra.mxu0 %v481
  %483 = vmatprep.subr.mxu0 0.0
  %v484 = vand.u32 %v29, 4294901760
  %v485 = vsub.f32 %v29, %v484
  %v486 = vand.u32 %v485, 4294901760
  %487 = vmatpush1.msra.mxu0 %v486
  %488 = vmatprep.subr.mxu0 0.0
  %v489 = vand.u32 %v28, 4294901760
  %v490 = vsub.f32 %v28, %v489
  %v491 = vand.u32 %v490, 4294901760
  %492 = vmatpush1.msra.mxu0 %v491
  %493 = vmatprep.subr.mxu0 0.0
  %v494 = vand.u32 %v27, 4294901760
  %v495 = vsub.f32 %v27, %v494
  %v496 = vand.u32 %v495, 4294901760
  %497 = vmatpush1.msra.mxu0 %v496
  %498 = vmatprep.subr.mxu0 0.0
  %v499 = vand.u32 %v26, 4294901760
  %v500 = vsub.f32 %v26, %v499
  %v501 = vand.u32 %v500, 4294901760
  %502 = vmatpush1.msra.mxu0 %v501
  %503 = vmatprep.subr.mxu0 0.0
  %v504 = vand.u32 %v25, 4294901760
  %v505 = vsub.f32 %v25, %v504
  %v506 = vand.u32 %v505, 4294901760
  %507 = vmatpush1.msra.mxu0 %v506
  %508 = vmatprep.subr.mxu0 0.0
  %v509 = vand.u32 %v24, 4294901760
  %v510 = vsub.f32 %v24, %v509
  %v511 = vand.u32 %v510, 4294901760
  %512 = vmatpush1.msra.mxu0 %v511
  %513 = vmatprep.subr.mxu0 0.0
  %v514 = vand.u32 %v23, 4294901760
  %v515 = vsub.f32 %v23, %v514
  %v516 = vand.u32 %v515, 4294901760
  %517 = vmatpush1.msra.mxu0 %v516
  %518 = vmatprep.subr.mxu0 0.0
  %v519 = vand.u32 %v22, 4294901760
  %v520 = vsub.f32 %v22, %v519
  %v521 = vand.u32 %v520, 4294901760
  %522 = vmatpush1.msra.mxu0 %v521
  %523 = vmatprep.subr.mxu0 0.0
  %v524 = vand.u32 %v21, 4294901760
  %v525 = vsub.f32 %v21, %v524
  %v526 = vand.u32 %v525, 4294901760
  %527 = vmatpush1.msra.mxu0 %v526
  %528 = vmatprep.subr.mxu0 0.0
  %v529 = vand.u32 %v20, 4294901760
  %v530 = vsub.f32 %v20, %v529
  %v531 = vand.u32 %v530, 4294901760
  %532 = vmatpush1.msra.mxu0 %v531
  %533 = vmatprep.subr.mxu0 0.0
  %534 = vmatpush2.msra.mxu0 0.0
  %535 = vmatprep.subr.mxu0 0.0
  %536 = vmatpush2.msra.mxu0 0.0
  %537 = vmatprep.subr.mxu0 0.0
  %538 = vmatpush2.msra.mxu0 0.0
  %539 = vmatprep.subr.mxu0 0.0
  %540 = vmatpush2.msra.mxu0 0.0
  %541 = vmatprep.subr.mxu0 0.0
  %542 = vmatpush2.msra.mxu0 0.0
  %543 = vmatprep.subr.mxu0 0.0
  %544 = vmatpush2.msra.mxu0 0.0
  %545 = vmatprep.subr.mxu0 0.0
  %546 = vmatpush2.msra.mxu0 0.0
  %547 = vmatprep.subr.mxu0 0.0
  %548 = vmatpush2.msra.mxu0 0.0
  %549 = vmatprep.subr.mxu0 0.0
  %550 = vmatpush2.msra.mxu0 0.0
  %551 = vmatprep.subr.mxu0 0.0
  %552 = vmatpush2.msra.mxu0 0.0
  %553 = vmatprep.subr.mxu0 0.0
  %554 = vmatpush2.msra.mxu0 0.0
  %555 = vmatprep.subr.mxu0 0.0
  %556 = vmatpush2.msra.mxu0 0.0
  %557 = vmatprep.subr.mxu0 0.0
  %558 = vmatpush2.msra.mxu0 0.0
  %559 = vmatprep.subr.mxu0 0.0
  %560 = vmatpush2.msra.mxu0 0.0
  %561 = vmatprep.subr.mxu0 0.0
  %562 = vmatpush2.msra.mxu0 0.0
  %563 = vmatprep.subr.mxu0 0.0
  %564 = vmatpush2.msra.mxu0 0.0
  %565 = vmatprep.mubr.f32.mxu0 0.0
  %v566 = vand.u32 %v40, 4294901760
  %567 = vmatmul.mubr.f32.gmra.mxu0 %v566
  %v568 = vpop.f32.mrf.mxu0
  %v569 = vadd.f32 %v456, %v568
  %v570 = vpop.f32.mrf.mxu0
  %571 = vdwg.mxu0
  %572 = vmatprep.subr.mxu0 0.0
  %573 = vmatpush1.msra.mxu0 0.0
  %574 = vmatprep.subr.mxu0 0.0
  %575 = vmatpush1.msra.mxu0 0.0
  %576 = vmatprep.subr.mxu0 0.0
  %v577 = vand.u32 %v33, 4294901760
  %578 = vmatpush1.msra.mxu0 %v577
  %579 = vmatprep.subr.mxu0 0.0
  %v580 = vand.u32 %v32, 4294901760
  %581 = vmatpush1.msra.mxu0 %v580
  %582 = vmatprep.subr.mxu0 0.0
  %v583 = vand.u32 %v31, 4294901760
  %584 = vmatpush1.msra.mxu0 %v583
  %585 = vmatprep.subr.mxu0 0.0
  %v586 = vand.u32 %v30, 4294901760
  %587 = vmatpush1.msra.mxu0 %v586
  %588 = vmatprep.subr.mxu0 0.0
  %v589 = vand.u32 %v29, 4294901760
  %590 = vmatpush1.msra.mxu0 %v589
  %591 = vmatprep.subr.mxu0 0.0
  %v592 = vand.u32 %v28, 4294901760
  %593 = vmatpush1.msra.mxu0 %v592
  %594 = vmatprep.subr.mxu0 0.0
  %v595 = vand.u32 %v27, 4294901760
  %596 = vmatpush1.msra.mxu0 %v595
  %597 = vmatprep.subr.mxu0 0.0
  %v598 = vand.u32 %v26, 4294901760
  %599 = vmatpush1.msra.mxu0 %v598
  %600 = vmatprep.subr.mxu0 0.0
  %v601 = vand.u32 %v25, 4294901760
  %602 = vmatpush1.msra.mxu0 %v601
  %603 = vmatprep.subr.mxu0 0.0
  %v604 = vand.u32 %v24, 4294901760
  %605 = vmatpush1.msra.mxu0 %v604
  %606 = vmatprep.subr.mxu0 0.0
  %v607 = vand.u32 %v23, 4294901760
  %608 = vmatpush1.msra.mxu0 %v607
  %609 = vmatprep.subr.mxu0 0.0
  %v610 = vand.u32 %v22, 4294901760
  %611 = vmatpush1.msra.mxu0 %v610
  %612 = vmatprep.subr.mxu0 0.0
  %v613 = vand.u32 %v21, 4294901760
  %614 = vmatpush1.msra.mxu0 %v613
  %615 = vmatprep.subr.mxu0 0.0
  %v616 = vand.u32 %v20, 4294901760
  %617 = vmatpush1.msra.mxu0 %v616
  %618 = vmatprep.subr.mxu0 0.0
  %619 = vmatpush2.msra.mxu0 0.0
  %620 = vmatprep.subr.mxu0 0.0
  %621 = vmatpush2.msra.mxu0 0.0
  %622 = vmatprep.subr.mxu0 0.0
  %623 = vmatpush2.msra.mxu0 0.0
  %624 = vmatprep.subr.mxu0 0.0
  %625 = vmatpush2.msra.mxu0 0.0
  %626 = vmatprep.subr.mxu0 0.0
  %627 = vmatpush2.msra.mxu0 0.0
  %628 = vmatprep.subr.mxu0 0.0
  %629 = vmatpush2.msra.mxu0 0.0
  %630 = vmatprep.subr.mxu0 0.0
  %631 = vmatpush2.msra.mxu0 0.0
  %632 = vmatprep.subr.mxu0 0.0
  %633 = vmatpush2.msra.mxu0 0.0
  %634 = vmatprep.subr.mxu0 0.0
  %635 = vmatpush2.msra.mxu0 0.0
  %636 = vmatprep.subr.mxu0 0.0
  %637 = vmatpush2.msra.mxu0 0.0
  %638 = vmatprep.subr.mxu0 0.0
  %639 = vmatpush2.msra.mxu0 0.0
  %640 = vmatprep.subr.mxu0 0.0
  %641 = vmatpush2.msra.mxu0 0.0
  %642 = vmatprep.subr.mxu0 0.0
  %643 = vmatpush2.msra.mxu0 0.0
  %644 = vmatprep.subr.mxu0 0.0
  %645 = vmatpush2.msra.mxu0 0.0
  %646 = vmatprep.subr.mxu0 0.0
  %647 = vmatpush2.msra.mxu0 0.0
  %648 = vmatprep.subr.mxu0 0.0
  %649 = vmatpush2.msra.mxu0 0.0
  %650 = vmatprep.mubr.f32.mxu0 0.0
  %v651 = vand.u32 %v40, 4294901760
  %652 = vmatmul.mubr.f32.gmra.mxu0 %v651
  %v653 = vpop.f32.mrf.mxu0
  %v654 = vadd.f32 %v569, %v653
  %v655 = vpop.f32.mrf.mxu0
  %656 = vdwg.mxu0
  %v657 = vmax.f32 %v654, 0.0
  %v658 = vld [vmem:[%s2] sm:$0xff]
  %v659 = vld [vmem:[%s2 + $0x8] sm:$0xff]
  %v660 = vld [vmem:[%s2 + $0x10] sm:$0xff]
  %v661 = vld [vmem:[%s2 + $0x18] sm:$0xff]
  %v662 = vld [vmem:[%s2 + $0x20] sm:$0xff]
  %v663 = vld [vmem:[%s2 + $0x28] sm:$0xff]
  %v664 = vld [vmem:[%s2 + $0x30] sm:$0xff]
  %v665 = vld [vmem:[%s2 + $0x38] sm:$0xff]
  %v666 = vld [vmem:[%s2 + $0x40] sm:$0xff]
  %v667 = vld [vmem:[%s2 + $0x48] sm:$0xff]
  %v668 = vld [vmem:[%s2 + $0x50] sm:$0xff]
  %v669 = vld [vmem:[%s2 + $0x58] sm:$0xff]
  %v670 = vlaneseq
  %v671 = vshrl.u32 %v670, 7
  %v672 = vsub.s32 0, %v671
  %v673 = vrot.slane %v18, %v672
  %vm674 = vcmask 785408
  %v676 = vsel %vm674, %v657, 0
  %678 = vmatprep.subr.mxu0 0.0
  %679 = vmatpush1.msra.mxu0 0.0
  %680 = vmatprep.subr.mxu0 0.0
  %681 = vmatpush1.msra.mxu0 0.0
  %682 = vmatprep.subr.mxu0 0.0
  %683 = vmatpush1.msra.mxu0 0.0
  %684 = vmatprep.subr.mxu0 0.0
  %685 = vmatpush1.msra.mxu0 0.0
  %686 = vmatprep.subr.mxu0 0.0
  %v687 = vand.u32 %v669, 4294901760
  %688 = vmatpush1.msra.mxu0 %v687
  %689 = vmatprep.subr.mxu0 0.0
  %v690 = vand.u32 %v668, 4294901760
  %691 = vmatpush1.msra.mxu0 %v690
  %692 = vmatprep.subr.mxu0 0.0
  %v693 = vand.u32 %v667, 4294901760
  %694 = vmatpush1.msra.mxu0 %v693
  %695 = vmatprep.subr.mxu0 0.0
  %v696 = vand.u32 %v666, 4294901760
  %697 = vmatpush1.msra.mxu0 %v696
  %698 = vmatprep.subr.mxu0 0.0
  %v699 = vand.u32 %v665, 4294901760
  %700 = vmatpush1.msra.mxu0 %v699
  %701 = vmatprep.subr.mxu0 0.0
  %v702 = vand.u32 %v664, 4294901760
  %703 = vmatpush1.msra.mxu0 %v702
  %704 = vmatprep.subr.mxu0 0.0
  %v705 = vand.u32 %v663, 4294901760
  %706 = vmatpush1.msra.mxu0 %v705
  %707 = vmatprep.subr.mxu0 0.0
  %v708 = vand.u32 %v662, 4294901760
  %709 = vmatpush1.msra.mxu0 %v708
  %710 = vmatprep.subr.mxu0 0.0
  %v711 = vand.u32 %v661, 4294901760
  %712 = vmatpush1.msra.mxu0 %v711
  %713 = vmatprep.subr.mxu0 0.0
  %v714 = vand.u32 %v660, 4294901760
  %715 = vmatpush1.msra.mxu0 %v714
  %716 = vmatprep.subr.mxu0 0.0
  %v717 = vand.u32 %v659, 4294901760
  %718 = vmatpush1.msra.mxu0 %v717
  %719 = vmatprep.subr.mxu0 0.0
  %v720 = vand.u32 %v658, 4294901760
  %721 = vmatpush1.msra.mxu0 %v720
  %722 = vmatprep.subr.mxu0 0.0
  %723 = vmatpush2.msra.mxu0 0.0
  %724 = vmatprep.subr.mxu0 0.0
  %725 = vmatpush2.msra.mxu0 0.0
  %726 = vmatprep.subr.mxu0 0.0
  %727 = vmatpush2.msra.mxu0 0.0
  %728 = vmatprep.subr.mxu0 0.0
  %729 = vmatpush2.msra.mxu0 0.0
  %730 = vmatprep.subr.mxu0 0.0
  %731 = vmatpush2.msra.mxu0 0.0
  %732 = vmatprep.subr.mxu0 0.0
  %733 = vmatpush2.msra.mxu0 0.0
  %734 = vmatprep.subr.mxu0 0.0
  %735 = vmatpush2.msra.mxu0 0.0
  %736 = vmatprep.subr.mxu0 0.0
  %737 = vmatpush2.msra.mxu0 0.0
  %738 = vmatprep.subr.mxu0 0.0
  %739 = vmatpush2.msra.mxu0 0.0
  %740 = vmatprep.subr.mxu0 0.0
  %741 = vmatpush2.msra.mxu0 0.0
  %742 = vmatprep.subr.mxu0 0.0
  %743 = vmatpush2.msra.mxu0 0.0
  %744 = vmatprep.subr.mxu0 0.0
  %745 = vmatpush2.msra.mxu0 0.0
  %746 = vmatprep.subr.mxu0 0.0
  %747 = vmatpush2.msra.mxu0 0.0
  %748 = vmatprep.subr.mxu0 0.0
  %749 = vmatpush2.msra.mxu0 0.0
  %750 = vmatprep.subr.mxu0 0.0
  %751 = vmatpush2.msra.mxu0 0.0
  %752 = vmatprep.subr.mxu0 0.0
  %753 = vmatpush2.msra.mxu0 0.0
  %754 = vmatprep.mubr.f32.mxu0 0.0
  %v755 = vand.u32 %v676, 4294901760
  %v756 = vsub.f32 %v676, %v755
  %v757 = vand.u32 %v756, 4294901760
  %v758 = vsub.f32 %v756, %v757
  %v759 = vand.u32 %v758, 4294901760
  %760 = vmatmul.mubr.f32.gmra.mxu0 %v759
  %v761 = vpop.f32.mrf.mxu0
  %v762 = vadd.f32 %v673, %v761
  %v763 = vpop.f32.mrf.mxu0
  %764 = vdwg.mxu0
  %765 = vmatprep.subr.mxu0 0.0
  %766 = vmatpush1.msra.mxu0 0.0
  %767 = vmatprep.subr.mxu0 0.0
  %768 = vmatpush1.msra.mxu0 0.0
  %769 = vmatprep.subr.mxu0 0.0
  %770 = vmatpush1.msra.mxu0 0.0
  %771 = vmatprep.subr.mxu0 0.0
  %772 = vmatpush1.msra.mxu0 0.0
  %773 = vmatprep.subr.mxu0 0.0
  %v774 = vand.u32 %v669, 4294901760
  %v775 = vsub.f32 %v669, %v774
  %v776 = vand.u32 %v775, 4294901760
  %v777 = vsub.f32 %v775, %v776
  %v778 = vand.u32 %v777, 4294901760
  %779 = vmatpush1.msra.mxu0 %v778
  %780 = vmatprep.subr.mxu0 0.0
  %v781 = vand.u32 %v668, 4294901760
  %v782 = vsub.f32 %v668, %v781
  %v783 = vand.u32 %v782, 4294901760
  %v784 = vsub.f32 %v782, %v783
  %v785 = vand.u32 %v784, 4294901760
  %786 = vmatpush1.msra.mxu0 %v785
  %787 = vmatprep.subr.mxu0 0.0
  %v788 = vand.u32 %v667, 4294901760
  %v789 = vsub.f32 %v667, %v788
  %v790 = vand.u32 %v789, 4294901760
  %v791 = vsub.f32 %v789, %v790
  %v792 = vand.u32 %v791, 4294901760
  %793 = vmatpush1.msra.mxu0 %v792
  %794 = vmatprep.subr.mxu0 0.0
  %v795 = vand.u32 %v666, 4294901760
  %v796 = vsub.f32 %v666, %v795
  %v797 = vand.u32 %v796, 4294901760
  %v798 = vsub.f32 %v796, %v797
  %v799 = vand.u32 %v798, 4294901760
  %800 = vmatpush1.msra.mxu0 %v799
  %801 = vmatprep.subr.mxu0 0.0
  %v802 = vand.u32 %v665, 4294901760
  %v803 = vsub.f32 %v665, %v802
  %v804 = vand.u32 %v803, 4294901760
  %v805 = vsub.f32 %v803, %v804
  %v806 = vand.u32 %v805, 4294901760
  %807 = vmatpush1.msra.mxu0 %v806
  %808 = vmatprep.subr.mxu0 0.0
  %v809 = vand.u32 %v664, 4294901760
  %v810 = vsub.f32 %v664, %v809
  %v811 = vand.u32 %v810, 4294901760
  %v812 = vsub.f32 %v810, %v811
  %v813 = vand.u32 %v812, 4294901760
  %814 = vmatpush1.msra.mxu0 %v813
  %815 = vmatprep.subr.mxu0 0.0
  %v816 = vand.u32 %v663, 4294901760
  %v817 = vsub.f32 %v663, %v816
  %v818 = vand.u32 %v817, 4294901760
  %v819 = vsub.f32 %v817, %v818
  %v820 = vand.u32 %v819, 4294901760
  %821 = vmatpush1.msra.mxu0 %v820
  %822 = vmatprep.subr.mxu0 0.0
  %v823 = vand.u32 %v662, 4294901760
  %v824 = vsub.f32 %v662, %v823
  %v825 = vand.u32 %v824, 4294901760
  %v826 = vsub.f32 %v824, %v825
  %v827 = vand.u32 %v826, 4294901760
  %828 = vmatpush1.msra.mxu0 %v827
  %829 = vmatprep.subr.mxu0 0.0
  %v830 = vand.u32 %v661, 4294901760
  %v831 = vsub.f32 %v661, %v830
  %v832 = vand.u32 %v831, 4294901760
  %v833 = vsub.f32 %v831, %v832
  %v834 = vand.u32 %v833, 4294901760
  %835 = vmatpush1.msra.mxu0 %v834
  %836 = vmatprep.subr.mxu0 0.0
  %v837 = vand.u32 %v660, 4294901760
  %v838 = vsub.f32 %v660, %v837
  %v839 = vand.u32 %v838, 4294901760
  %v840 = vsub.f32 %v838, %v839
  %v841 = vand.u32 %v840, 4294901760
  %842 = vmatpush1.msra.mxu0 %v841
  %843 = vmatprep.subr.mxu0 0.0
  %v844 = vand.u32 %v659, 4294901760
  %v845 = vsub.f32 %v659, %v844
  %v846 = vand.u32 %v845, 4294901760
  %v847 = vsub.f32 %v845, %v846
  %v848 = vand.u32 %v847, 4294901760
  %849 = vmatpush1.msra.mxu0 %v848
  %850 = vmatprep.subr.mxu0 0.0
  %v851 = vand.u32 %v658, 4294901760
  %v852 = vsub.f32 %v658, %v851
  %v853 = vand.u32 %v852, 4294901760
  %v854 = vsub.f32 %v852, %v853
  %v855 = vand.u32 %v854, 4294901760
  %856 = vmatpush1.msra.mxu0 %v855
  %857 = vmatprep.subr.mxu0 0.0
  %858 = vmatpush2.msra.mxu0 0.0
  %859 = vmatprep.subr.mxu0 0.0
  %860 = vmatpush2.msra.mxu0 0.0
  %861 = vmatprep.subr.mxu0 0.0
  %862 = vmatpush2.msra.mxu0 0.0
  %863 = vmatprep.subr.mxu0 0.0
  %864 = vmatpush2.msra.mxu0 0.0
  %865 = vmatprep.subr.mxu0 0.0
  %866 = vmatpush2.msra.mxu0 0.0
  %867 = vmatprep.subr.mxu0 0.0
  %868 = vmatpush2.msra.mxu0 0.0
  %869 = vmatprep.subr.mxu0 0.0
  %870 = vmatpush2.msra.mxu0 0.0
  %871 = vmatprep.subr.mxu0 0.0
  %872 = vmatpush2.msra.mxu0 0.0
  %873 = vmatprep.subr.mxu0 0.0
  %874 = vmatpush2.msra.mxu0 0.0
  %875 = vmatprep.subr.mxu0 0.0
  %876 = vmatpush2.msra.mxu0 0.0
  %877 = vmatprep.subr.mxu0 0.0
  %878 = vmatpush2.msra.mxu0 0.0
  %879 = vmatprep.subr.mxu0 0.0
  %880 = vmatpush2.msra.mxu0 0.0
  %881 = vmatprep.subr.mxu0 0.0
  %882 = vmatpush2.msra.mxu0 0.0
  %883 = vmatprep.subr.mxu0 0.0
  %884 = vmatpush2.msra.mxu0 0.0
  %885 = vmatprep.subr.mxu0 0.0
  %886 = vmatpush2.msra.mxu0 0.0
  %887 = vmatprep.subr.mxu0 0.0
  %888 = vmatpush2.msra.mxu0 0.0
  %889 = vmatprep.mubr.f32.mxu0 0.0
  %v890 = vand.u32 %v676, 4294901760
  %891 = vmatmul.mubr.f32.gmra.mxu0 %v890
  %v892 = vpop.f32.mrf.mxu0
  %v893 = vadd.f32 %v762, %v892
  %v894 = vpop.f32.mrf.mxu0
  %895 = vdwg.mxu0
  %896 = vmatprep.subr.mxu0 0.0
  %897 = vmatpush1.msra.mxu0 0.0
  %898 = vmatprep.subr.mxu0 0.0
  %899 = vmatpush1.msra.mxu0 0.0
  %900 = vmatprep.subr.mxu0 0.0
  %901 = vmatpush1.msra.mxu0 0.0
  %902 = vmatprep.subr.mxu0 0.0
  %903 = vmatpush1.msra.mxu0 0.0
  %904 = vmatprep.subr.mxu0 0.0
  %v905 = vand.u32 %v669, 4294901760
  %v906 = vsub.f32 %v669, %v905
  %907 = vmatpush1.msra.mxu0 %v906
  %908 = vmatprep.subr.mxu0 0.0
  %v909 = vand.u32 %v668, 4294901760
  %v910 = vsub.f32 %v668, %v909
  %911 = vmatpush1.msra.mxu0 %v910
  %912 = vmatprep.subr.mxu0 0.0
  %v913 = vand.u32 %v667, 4294901760
  %v914 = vsub.f32 %v667, %v913
  %915 = vmatpush1.msra.mxu0 %v914
  %916 = vmatprep.subr.mxu0 0.0
  %v917 = vand.u32 %v666, 4294901760
  %v918 = vsub.f32 %v666, %v917
  %919 = vmatpush1.msra.mxu0 %v918
  %920 = vmatprep.subr.mxu0 0.0
  %v921 = vand.u32 %v665, 4294901760
  %v922 = vsub.f32 %v665, %v921
  %923 = vmatpush1.msra.mxu0 %v922
  %924 = vmatprep.subr.mxu0 0.0
  %v925 = vand.u32 %v664, 4294901760
  %v926 = vsub.f32 %v664, %v925
  %927 = vmatpush1.msra.mxu0 %v926
  %928 = vmatprep.subr.mxu0 0.0
  %v929 = vand.u32 %v663, 4294901760
  %v930 = vsub.f32 %v663, %v929
  %931 = vmatpush1.msra.mxu0 %v930
  %932 = vmatprep.subr.mxu0 0.0
  %v933 = vand.u32 %v662, 4294901760
  %v934 = vsub.f32 %v662, %v933
  %935 = vmatpush1.msra.mxu0 %v934
  %936 = vmatprep.subr.mxu0 0.0
  %v937 = vand.u32 %v661, 4294901760
  %v938 = vsub.f32 %v661, %v937
  %939 = vmatpush1.msra.mxu0 %v938
  %940 = vmatprep.subr.mxu0 0.0
  %v941 = vand.u32 %v660, 4294901760
  %v942 = vsub.f32 %v660, %v941
  %943 = vmatpush1.msra.mxu0 %v942
  %944 = vmatprep.subr.mxu0 0.0
  %v945 = vand.u32 %v659, 4294901760
  %v946 = vsub.f32 %v659, %v945
  %947 = vmatpush1.msra.mxu0 %v946
  %948 = vmatprep.subr.mxu0 0.0
  %v949 = vand.u32 %v658, 4294901760
  %v950 = vsub.f32 %v658, %v949
  %951 = vmatpush1.msra.mxu0 %v950
  %952 = vmatprep.subr.mxu0 0.0
  %953 = vmatpush2.msra.mxu0 0.0
  %954 = vmatprep.subr.mxu0 0.0
  %955 = vmatpush2.msra.mxu0 0.0
  %956 = vmatprep.subr.mxu0 0.0
  %957 = vmatpush2.msra.mxu0 0.0
  %958 = vmatprep.subr.mxu0 0.0
  %959 = vmatpush2.msra.mxu0 0.0
  %960 = vmatprep.subr.mxu0 0.0
  %961 = vmatpush2.msra.mxu0 0.0
  %962 = vmatprep.subr.mxu0 0.0
  %963 = vmatpush2.msra.mxu0 0.0
  %964 = vmatprep.subr.mxu0 0.0
  %965 = vmatpush2.msra.mxu0 0.0
  %966 = vmatprep.subr.mxu0 0.0
  %967 = vmatpush2.msra.mxu0 0.0
  %968 = vmatprep.subr.mxu0 0.0
  %969 = vmatpush2.msra.mxu0 0.0
  %970 = vmatprep.subr.mxu0 0.0
  %971 = vmatpush2.msra.mxu0 0.0
  %972 = vmatprep.subr.mxu0 0.0
  %973 = vmatpush2.msra.mxu0 0.0
  %974 = vmatprep.subr.mxu0 0.0
  %975 = vmatpush2.msra.mxu0 0.0
  %976 = vmatprep.subr.mxu0 0.0
  %977 = vmatpush2.msra.mxu0 0.0
  %978 = vmatprep.subr.mxu0 0.0
  %979 = vmatpush2.msra.mxu0 0.0
  %980 = vmatprep.subr.mxu0 0.0
  %981 = vmatpush2.msra.mxu0 0.0
  %982 = vmatprep.subr.mxu0 0.0
  %983 = vmatpush2.msra.mxu0 0.0
  %984 = vmatprep.mubr.f32.mxu0 0.0
  %v985 = vand.u32 %v676, 4294901760
  %v986 = vsub.f32 %v676, %v985
  %987 = vmatmul.mubr.f32.gmra.mxu0 %v986
  %v988 = vpop.f32.mrf.mxu0
  %v989 = vadd.f32 %v893, %v988
  %v990 = vpop.f32.mrf.mxu0
  %991 = vdwg.mxu0
  %992 = vmatprep.subr.mxu0 0.0
  %993 = vmatpush1.msra.mxu0 0.0
  %994 = vmatprep.subr.mxu0 0.0
  %995 = vmatpush1.msra.mxu0 0.0
  %996 = vmatprep.subr.mxu0 0.0
  %997 = vmatpush1.msra.mxu0 0.0
  %998 = vmatprep.subr.mxu0 0.0
  %999 = vmatpush1.msra.mxu0 0.0
  %1000 = vmatprep.subr.mxu0 0.0
  %v1001 = vand.u32 %v669, 4294901760
  %1002 = vmatpush1.msra.mxu0 %v1001
  %1003 = vmatprep.subr.mxu0 0.0
  %v1004 = vand.u32 %v668, 4294901760
  %1005 = vmatpush1.msra.mxu0 %v1004
  %1006 = vmatprep.subr.mxu0 0.0
  %v1007 = vand.u32 %v667, 4294901760
  %1008 = vmatpush1.msra.mxu0 %v1007
  %1009 = vmatprep.subr.mxu0 0.0
  %v1010 = vand.u32 %v666, 4294901760
  %1011 = vmatpush1.msra.mxu0 %v1010
  %1012 = vmatprep.subr.mxu0 0.0
  %v1013 = vand.u32 %v665, 4294901760
  %1014 = vmatpush1.msra.mxu0 %v1013
  %1015 = vmatprep.subr.mxu0 0.0
  %v1016 = vand.u32 %v664, 4294901760
  %1017 = vmatpush1.msra.mxu0 %v1016
  %1018 = vmatprep.subr.mxu0 0.0
  %v1019 = vand.u32 %v663, 4294901760
  %1020 = vmatpush1.msra.mxu0 %v1019
  %1021 = vmatprep.subr.mxu0 0.0
  %v1022 = vand.u32 %v662, 4294901760
  %1023 = vmatpush1.msra.mxu0 %v1022
  %1024 = vmatprep.subr.mxu0 0.0
  %v1025 = vand.u32 %v661, 4294901760
  %1026 = vmatpush1.msra.mxu0 %v1025
  %1027 = vmatprep.subr.mxu0 0.0
  %v1028 = vand.u32 %v660, 4294901760
  %1029 = vmatpush1.msra.mxu0 %v1028
  %1030 = vmatprep.subr.mxu0 0.0
  %v1031 = vand.u32 %v659, 4294901760
  %1032 = vmatpush1.msra.mxu0 %v1031
  %1033 = vmatprep.subr.mxu0 0.0
  %v1034 = vand.u32 %v658, 4294901760
  %1035 = vmatpush1.msra.mxu0 %v1034
  %1036 = vmatprep.subr.mxu0 0.0
  %1037 = vmatpush2.msra.mxu0 0.0
  %1038 = vmatprep.subr.mxu0 0.0
  %1039 = vmatpush2.msra.mxu0 0.0
  %1040 = vmatprep.subr.mxu0 0.0
  %1041 = vmatpush2.msra.mxu0 0.0
  %1042 = vmatprep.subr.mxu0 0.0
  %1043 = vmatpush2.msra.mxu0 0.0
  %1044 = vmatprep.subr.mxu0 0.0
  %1045 = vmatpush2.msra.mxu0 0.0
  %1046 = vmatprep.subr.mxu0 0.0
  %1047 = vmatpush2.msra.mxu0 0.0
  %1048 = vmatprep.subr.mxu0 0.0
  %1049 = vmatpush2.msra.mxu0 0.0
  %1050 = vmatprep.subr.mxu0 0.0
  %1051 = vmatpush2.msra.mxu0 0.0
  %1052 = vmatprep.subr.mxu0 0.0
  %1053 = vmatpush2.msra.mxu0 0.0
  %1054 = vmatprep.subr.mxu0 0.0
  %1055 = vmatpush2.msra.mxu0 0.0
  %1056 = vmatprep.subr.mxu0 0.0
  %1057 = vmatpush2.msra.mxu0 0.0
  %1058 = vmatprep.subr.mxu0 0.0
  %1059 = vmatpush2.msra.mxu0 0.0
  %1060 = vmatprep.subr.mxu0 0.0
  %1061 = vmatpush2.msra.mxu0 0.0
  %1062 = vmatprep.subr.mxu0 0.0
  %1063 = vmatpush2.msra.mxu0 0.0
  %1064 = vmatprep.subr.mxu0 0.0
  %1065 = vmatpush2.msra.mxu0 0.0
  %1066 = vmatprep.subr.mxu0 0.0
  %1067 = vmatpush2.msra.mxu0 0.0
  %1068 = vmatprep.mubr.f32.mxu0 0.0
  %v1069 = vand.u32 %v676, 4294901760
  %v1070 = vsub.f32 %v676, %v1069
  %v1071 = vand.u32 %v1070, 4294901760
  %1072 = vmatmul.mubr.f32.gmra.mxu0 %v1071
  %v1073 = vpop.f32.mrf.mxu0
  %v1074 = vadd.f32 %v989, %v1073
  %v1075 = vpop.f32.mrf.mxu0
  %1076 = vdwg.mxu0
  %1077 = vmatprep.subr.mxu0 0.0
  %1078 = vmatpush1.msra.mxu0 0.0
  %1079 = vmatprep.subr.mxu0 0.0
  %1080 = vmatpush1.msra.mxu0 0.0
  %1081 = vmatprep.subr.mxu0 0.0
  %1082 = vmatpush1.msra.mxu0 0.0
  %1083 = vmatprep.subr.mxu0 0.0
  %1084 = vmatpush1.msra.mxu0 0.0
  %1085 = vmatprep.subr.mxu0 0.0
  %v1086 = vand.u32 %v669, 4294901760
  %v1087 = vsub.f32 %v669, %v1086
  %v1088 = vand.u32 %v1087, 4294901760
  %1089 = vmatpush1.msra.mxu0 %v1088
  %1090 = vmatprep.subr.mxu0 0.0
  %v1091 = vand.u32 %v668, 4294901760
  %v1092 = vsub.f32 %v668, %v1091
  %v1093 = vand.u32 %v1092, 4294901760
  %1094 = vmatpush1.msra.mxu0 %v1093
  %1095 = vmatprep.subr.mxu0 0.0
  %v1096 = vand.u32 %v667, 4294901760
  %v1097 = vsub.f32 %v667, %v1096
  %v1098 = vand.u32 %v1097, 4294901760
  %1099 = vmatpush1.msra.mxu0 %v1098
  %1100 = vmatprep.subr.mxu0 0.0
  %v1101 = vand.u32 %v666, 4294901760
  %v1102 = vsub.f32 %v666, %v1101
  %v1103 = vand.u32 %v1102, 4294901760
  %1104 = vmatpush1.msra.mxu0 %v1103
  %1105 = vmatprep.subr.mxu0 0.0
  %v1106 = vand.u32 %v665, 4294901760
  %v1107 = vsub.f32 %v665, %v1106
  %v1108 = vand.u32 %v1107, 4294901760
  %1109 = vmatpush1.msra.mxu0 %v1108
  %1110 = vmatprep.subr.mxu0 0.0
  %v1111 = vand.u32 %v664, 4294901760
  %v1112 = vsub.f32 %v664, %v1111
  %v1113 = vand.u32 %v1112, 4294901760
  %1114 = vmatpush1.msra.mxu0 %v1113
  %1115 = vmatprep.subr.mxu0 0.0
  %v1116 = vand.u32 %v663, 4294901760
  %v1117 = vsub.f32 %v663, %v1116
  %v1118 = vand.u32 %v1117, 4294901760
  %1119 = vmatpush1.msra.mxu0 %v1118
  %1120 = vmatprep.subr.mxu0 0.0
  %v1121 = vand.u32 %v662, 4294901760
  %v1122 = vsub.f32 %v662, %v1121
  %v1123 = vand.u32 %v1122, 4294901760
  %1124 = vmatpush1.msra.mxu0 %v1123
  %1125 = vmatprep.subr.mxu0 0.0
  %v1126 = vand.u32 %v661, 4294901760
  %v1127 = vsub.f32 %v661, %v1126
  %v1128 = vand.u32 %v1127, 4294901760
  %1129 = vmatpush1.msra.mxu0 %v1128
  %1130 = vmatprep.subr.mxu0 0.0
  %v1131 = vand.u32 %v660, 4294901760
  %v1132 = vsub.f32 %v660, %v1131
  %v1133 = vand.u32 %v1132, 4294901760
  %1134 = vmatpush1.msra.mxu0 %v1133
  %1135 = vmatprep.subr.mxu0 0.0
  %v1136 = vand.u32 %v659, 4294901760
  %v1137 = vsub.f32 %v659, %v1136
  %v1138 = vand.u32 %v1137, 4294901760
  %1139 = vmatpush1.msra.mxu0 %v1138
  %1140 = vmatprep.subr.mxu0 0.0
  %v1141 = vand.u32 %v658, 4294901760
  %v1142 = vsub.f32 %v658, %v1141
  %v1143 = vand.u32 %v1142, 4294901760
  %1144 = vmatpush1.msra.mxu0 %v1143
  %1145 = vmatprep.subr.mxu0 0.0
  %1146 = vmatpush2.msra.mxu0 0.0
  %1147 = vmatprep.subr.mxu0 0.0
  %1148 = vmatpush2.msra.mxu0 0.0
  %1149 = vmatprep.subr.mxu0 0.0
  %1150 = vmatpush2.msra.mxu0 0.0
  %1151 = vmatprep.subr.mxu0 0.0
  %1152 = vmatpush2.msra.mxu0 0.0
  %1153 = vmatprep.subr.mxu0 0.0
  %1154 = vmatpush2.msra.mxu0 0.0
  %1155 = vmatprep.subr.mxu0 0.0
  %1156 = vmatpush2.msra.mxu0 0.0
  %1157 = vmatprep.subr.mxu0 0.0
  %1158 = vmatpush2.msra.mxu0 0.0
  %1159 = vmatprep.subr.mxu0 0.0
  %1160 = vmatpush2.msra.mxu0 0.0
  %1161 = vmatprep.subr.mxu0 0.0
  %1162 = vmatpush2.msra.mxu0 0.0
  %1163 = vmatprep.subr.mxu0 0.0
  %1164 = vmatpush2.msra.mxu0 0.0
  %1165 = vmatprep.subr.mxu0 0.0
  %1166 = vmatpush2.msra.mxu0 0.0
  %1167 = vmatprep.subr.mxu0 0.0
  %1168 = vmatpush2.msra.mxu0 0.0
  %1169 = vmatprep.subr.mxu0 0.0
  %1170 = vmatpush2.msra.mxu0 0.0
  %1171 = vmatprep.subr.mxu0 0.0
  %1172 = vmatpush2.msra.mxu0 0.0
  %1173 = vmatprep.subr.mxu0 0.0
  %1174 = vmatpush2.msra.mxu0 0.0
  %1175 = vmatprep.subr.mxu0 0.0
  %1176 = vmatpush2.msra.mxu0 0.0
  %1177 = vmatprep.mubr.f32.mxu0 0.0
  %v1178 = vand.u32 %v676, 4294901760
  %1179 = vmatmul.mubr.f32.gmra.mxu0 %v1178
  %v1180 = vpop.f32.mrf.mxu0
  %v1181 = vadd.f32 %v1074, %v1180
  %v1182 = vpop.f32.mrf.mxu0
  %1183 = vdwg.mxu0
  %1184 = vmatprep.subr.mxu0 0.0
  %1185 = vmatpush1.msra.mxu0 0.0
  %1186 = vmatprep.subr.mxu0 0.0
  %1187 = vmatpush1.msra.mxu0 0.0
  %1188 = vmatprep.subr.mxu0 0.0
  %1189 = vmatpush1.msra.mxu0 0.0
  %1190 = vmatprep.subr.mxu0 0.0
  %1191 = vmatpush1.msra.mxu0 0.0
  %1192 = vmatprep.subr.mxu0 0.0
  %v1193 = vand.u32 %v669, 4294901760
  %1194 = vmatpush1.msra.mxu0 %v1193
  %1195 = vmatprep.subr.mxu0 0.0
  %v1196 = vand.u32 %v668, 4294901760
  %1197 = vmatpush1.msra.mxu0 %v1196
  %1198 = vmatprep.subr.mxu0 0.0
  %v1199 = vand.u32 %v667, 4294901760
  %1200 = vmatpush1.msra.mxu0 %v1199
  %1201 = vmatprep.subr.mxu0 0.0
  %v1202 = vand.u32 %v666, 4294901760
  %1203 = vmatpush1.msra.mxu0 %v1202
  %1204 = vmatprep.subr.mxu0 0.0
  %v1205 = vand.u32 %v665, 4294901760
  %1206 = vmatpush1.msra.mxu0 %v1205
  %1207 = vmatprep.subr.mxu0 0.0
  %v1208 = vand.u32 %v664, 4294901760
  %1209 = vmatpush1.msra.mxu0 %v1208
  %1210 = vmatprep.subr.mxu0 0.0
  %v1211 = vand.u32 %v663, 4294901760
  %1212 = vmatpush1.msra.mxu0 %v1211
  %1213 = vmatprep.subr.mxu0 0.0
  %v1214 = vand.u32 %v662, 4294901760
  %1215 = vmatpush1.msra.mxu0 %v1214
  %1216 = vmatprep.subr.mxu0 0.0
  %v1217 = vand.u32 %v661, 4294901760
  %1218 = vmatpush1.msra.mxu0 %v1217
  %1219 = vmatprep.subr.mxu0 0.0
  %v1220 = vand.u32 %v660, 4294901760
  %1221 = vmatpush1.msra.mxu0 %v1220
  %1222 = vmatprep.subr.mxu0 0.0
  %v1223 = vand.u32 %v659, 4294901760
  %1224 = vmatpush1.msra.mxu0 %v1223
  %1225 = vmatprep.subr.mxu0 0.0
  %v1226 = vand.u32 %v658, 4294901760
  %1227 = vmatpush1.msra.mxu0 %v1226
  %1228 = vmatprep.subr.mxu0 0.0
  %1229 = vmatpush2.msra.mxu0 0.0
  %1230 = vmatprep.subr.mxu0 0.0
  %1231 = vmatpush2.msra.mxu0 0.0
  %1232 = vmatprep.subr.mxu0 0.0
  %1233 = vmatpush2.msra.mxu0 0.0
  %1234 = vmatprep.subr.mxu0 0.0
  %1235 = vmatpush2.msra.mxu0 0.0
  %1236 = vmatprep.subr.mxu0 0.0
  %1237 = vmatpush2.msra.mxu0 0.0
  %1238 = vmatprep.subr.mxu0 0.0
  %1239 = vmatpush2.msra.mxu0 0.0
  %1240 = vmatprep.subr.mxu0 0.0
  %1241 = vmatpush2.msra.mxu0 0.0
  %1242 = vmatprep.subr.mxu0 0.0
  %1243 = vmatpush2.msra.mxu0 0.0
  %1244 = vmatprep.subr.mxu0 0.0
  %1245 = vmatpush2.msra.mxu0 0.0
  %1246 = vmatprep.subr.mxu0 0.0
  %1247 = vmatpush2.msra.mxu0 0.0
  %1248 = vmatprep.subr.mxu0 0.0
  %1249 = vmatpush2.msra.mxu0 0.0
  %1250 = vmatprep.subr.mxu0 0.0
  %1251 = vmatpush2.msra.mxu0 0.0
  %1252 = vmatprep.subr.mxu0 0.0
  %1253 = vmatpush2.msra.mxu0 0.0
  %1254 = vmatprep.subr.mxu0 0.0
  %1255 = vmatpush2.msra.mxu0 0.0
  %1256 = vmatprep.subr.mxu0 0.0
  %1257 = vmatpush2.msra.mxu0 0.0
  %1258 = vmatprep.subr.mxu0 0.0
  %1259 = vmatpush2.msra.mxu0 0.0
  %1260 = vmatprep.mubr.f32.mxu0 0.0
  %v1261 = vand.u32 %v676, 4294901760
  %1262 = vmatmul.mubr.f32.gmra.mxu0 %v1261
  %v1263 = vpop.f32.mrf.mxu0
  %v1264 = vadd.f32 %v1181, %v1263
  %v1265 = vpop.f32.mrf.mxu0
  %1266 = vdwg.mxu0
  %vm1267 = vcmask 31744
  %1268 = vst.msk [vmem:[%s4] sm:$0xff] %vm1267, %v1264
  // Predicated region
  $region18: #{multimodal_deception_forward.1} parent=0 // pred_check
    _
  $region19: #{multimodal_deception_forward.1} parent=0 // pred_check_branch
    %1270 = sbr.rel (0) target = $region21
  $region20: #{multimodal_deception_forward.1} parent=0 // pred_region
    _
  $region21: #{multimodal_deception_forward.1} parent=0 // pred_fallthru
    _
  // Predicated region
  $region22: #{multimodal_deception_forward.1} parent=0 // pred_check
    _
  $region23: #{multimodal_deception_forward.1} parent=0 // pred_check_branch
    %1272 = sbr.rel (0) target = $region25
  $region24: #{multimodal_deception_forward.1} parent=0 // pred_region
    _
  $region25: #{multimodal_deception_forward.1} parent=0 // pred_fallthru
    _

</llo_original>
